<compile_context>
chip_gen: v5e
topology: v5e:2x2
jax: 0.10.0
libtpu: 0.0.40
codegen_flags: <defaults>
</compile_context>

<pallas_src>
import jax
import jax.numpy as jnp
from jax import lax
from jax.experimental import pallas as pl
from jax.experimental.pallas import tpu as pltpu


_LANE = 128
_F32 = jnp.float32
_BF16 = jnp.bfloat16
# F.normalize eps=1e-12: rsqrt(max(sum_sq, eps^2)) == 1/max(norm, eps).
_EPS2 = 1e-24
# Below this N the block-diagonal single-matmul path is used.
_BLOCKDIAG_N_MAX = 64


def _round_up(x, m):
    return ((x + m - 1) // m) * m


def _vmem_capacity_bytes():
    """Physical VMEM per core; conservative 64 MiB (v7x) fallback."""
    try:
        info = pltpu.get_tpu_info()
        cap = getattr(info, "vmem_capacity_bytes", None)
        if cap:
            return int(cap)
    except Exception:
        pass
    return 64 * 1024 * 1024


def _pick_tb(B, N, D, Rp, Op, use_bd, budget_bytes):
    """Largest batch-fold tb (divisor of B) that fits the VMEM budget while
    leaving >=4 grid steps when possible (>=2 per TC on v7x)."""
    max_tb = min(B, max(8, -(-512 // N)) if use_bd else 8)

    def est(tb):
        m = tb * N
        adj_elems = m * m if use_bd else tb * N * N
        adj_b = 2 * adj_elems * 2                 # double-buffered bf16
        nodes_b = 2 * m * D * 2
        out_b = 2 * m * Op * 4
        weights = 2 * (3 * D * Rp * 2 + 3 * Rp * Op * 2 + (3 * Rp + Op) * 4)
        scratch = 0 if use_bd else 2 * m * Rp * 2  # bf16 agg scratch
        inter = m * Rp * 20 + m * Op * 8 + (adj_elems if use_bd else N * N) * 10
        return adj_b + nodes_b + out_b + weights + scratch + inter

    divisors = [t for t in range(1, max_tb + 1)
                if B % t == 0 and ((t * N) % 8 == 0 or t == B)]
    if not divisors:
        divisors = [1]
    for min_steps in (4, 2, 1):
        cands = [t for t in divisors if B // t >= min_steps and est(t) <= budget_bytes]
        if cands:
            return max(cands)
    return min(divisors)


def _make_blockdiag_kernel(m):
    """Small-N path: one block-diagonal [m, m] adjacency per grid step."""

    def kernel(nodes_ref, adj_ref,
               w_src_ref, b_src_ref, w_dst_ref, b_dst_ref,
               w_self_ref, b_self_ref,
               w_u_src_ref, w_u_self_ref, w_u_dst_ref, b_u_ref,
               out_ref):
        x = nodes_ref[...]                                               # bf16 [m, D]
        # Input projections (bf16 MXU, f32 acc); cast to bf16 once after bias.
        src = (jnp.dot(x, w_src_ref[...], preferred_element_type=_F32)
               + b_src_ref[...]).astype(_BF16)
        dst = (jnp.dot(x, w_dst_ref[...], preferred_element_type=_F32)
               + b_dst_ref[...]).astype(_BF16)

        a_bf = adj_ref[...]                                              # bf16 [m, m]
        a_f = a_bf.astype(_F32)
        a2 = a_f * a_f

        # Row L2 norms (torch dim=2): scale rows of (a @ src).
        inv_row = lax.rsqrt(jnp.maximum(jnp.sum(a2, axis=1, keepdims=True), _EPS2))
        # Column L2 norms (torch dim=1) produced directly in [m, .] layout via a
        # transposed-LHS bf16 matmul against a 128-lane ones block (no [1,m]
        # lane->sublane relayout, no Rp-wide f32 matmul).
        ones_b = jnp.ones((m, _LANE), _BF16)
        col_ss = lax.dot_general(a2.astype(_BF16), ones_b, (((0,), (0,)), ((), ())),
                                 preferred_element_type=_F32)            # [m, 128]
        inv_col = lax.rsqrt(jnp.maximum(col_ss[:, :1], _EPS2))           # [m, 1]

        # einsum('bjv,bij->biv') == diag(inv_row) @ (a @ src) per block.
        agg_src = (jnp.dot(a_bf, src, preferred_element_type=_F32)
                   * inv_row).astype(_BF16)
        # einsum('bjv,bji->biv') == diag(inv_col) @ (a^T @ dst); contraction over
        # axis 0 of both operands so no explicit transpose is built.
        agg_dst = (lax.dot_general(a_bf, dst, (((0,), (0,)), ((), ())),
                                   preferred_element_type=_F32)
                   * inv_col).astype(_BF16)

        # Self projection last (short live range).
        slf = (jnp.dot(x, w_self_ref[...], preferred_element_type=_F32)
               + b_self_ref[...])

        # node_update on concat([agg_src, slf, agg_dst]) == sum of 3 block matmuls.
        pre = (jnp.dot(agg_src, w_u_src_ref[...], preferred_element_type=_F32)
               + jnp.dot(slf.astype(_BF16), w_u_self_ref[...],
                         preferred_element_type=_F32)
               + jnp.dot(agg_dst, w_u_dst_ref[...], preferred_element_type=_F32)
               + b_u_ref[...])
        out_ref[...] = jnp.maximum(pre, 0.0).astype(out_ref.dtype)       # lane-dense store

    return kernel


def _make_batched_kernel(tb, n):
    """Large-N path: per-batch [N, N] aggregation with bf16 VMEM agg scratch."""

    def kernel(nodes_ref, adj_ref,
               w_src_ref, b_src_ref, w_dst_ref, b_dst_ref,
               w_self_ref, b_self_ref,
               w_u_src_ref, w_u_self_ref, w_u_dst_ref, b_u_ref,
               out_ref,
               agg_src_sc, agg_dst_sc):
        x = nodes_ref[...]                                               # bf16 [tb*n, D]
        src = (jnp.dot(x, w_src_ref[...], preferred_element_type=_F32)
               + b_src_ref[...]).astype(_BF16)
        dst = (jnp.dot(x, w_dst_ref[...], preferred_element_type=_F32)
               + b_dst_ref[...]).astype(_BF16)

        ones_b = jnp.ones((n, _LANE), _BF16)   # hoisted out of the batch loop

        for b in range(tb):
            a_bf = adj_ref[b]                                            # bf16 [n, n]
            a_f = a_bf.astype(_F32)
            a2 = a_f * a_f

            inv_row = lax.rsqrt(jnp.maximum(jnp.sum(a2, axis=1, keepdims=True), _EPS2))
            col_ss = lax.dot_general(a2.astype(_BF16), ones_b,
                                     (((0,), (0,)), ((), ())),
                                     preferred_element_type=_F32)        # [n, 128]
            inv_col = lax.rsqrt(jnp.maximum(col_ss[:, :1], _EPS2))

            src_b = src[b * n:(b + 1) * n]
            dst_b = dst[b * n:(b + 1) * n]

            # Scale in f32, cast once, store bf16 scratch (halves vst bytes).
            agg_src_sc[pl.ds(b * n, n), :] = (
                jnp.dot(a_bf, src_b, preferred_element_type=_F32) * inv_row
            ).astype(_BF16)
            agg_dst_sc[pl.ds(b * n, n), :] = (
                lax.dot_general(a_bf, dst_b, (((0,), (0,)), ((), ())),
                                preferred_element_type=_F32) * inv_col
            ).astype(_BF16)

        slf = (jnp.dot(x, w_self_ref[...], preferred_element_type=_F32)
               + b_self_ref[...])

        pre = (jnp.dot(agg_src_sc[...], w_u_src_ref[...], preferred_element_type=_F32)
               + jnp.dot(slf.astype(_BF16), w_u_self_ref[...],
                         preferred_element_type=_F32)
               + jnp.dot(agg_dst_sc[...], w_u_dst_ref[...], preferred_element_type=_F32)
               + b_u_ref[...])
        out_ref[...] = jnp.maximum(pre, 0.0).astype(out_ref.dtype)

    return kernel


def graphsage_forward(nodes, adj, kparams, out_dim):
    """nodes: [B, N, D] f32; adj: [B, N, N] f32 -> [B, N, out_dim] f32."""
    B, N, D = nodes.shape
    Rp = kparams["w_src"].shape[1]
    Op = kparams["w_u_src"].shape[1]

    use_bd = N <= _BLOCKDIAG_N_MAX
    cap = _vmem_capacity_bytes()
    budget = int(0.45 * cap)
    vmem_limit = max(32 * 1024 * 1024, int(0.75 * cap))

    tb = _pick_tb(B, N, D, Rp, Op, use_bd, budget)
    G = B // tb
    M = tb * N

    nodes_2d = nodes.astype(_BF16).reshape(B * N, D)   # fold batch into M
    adj_bf = adj.astype(_BF16)

    weight_args = (kparams["w_src"], kparams["b_src"],
                   kparams["w_dst"], kparams["b_dst"],
                   kparams["w_self"], kparams["b_self"],
                   kparams["w_u_src"], kparams["w_u_self"], kparams["w_u_dst"],
                   kparams["b_u"])

    def w_spec(shape):
        # Constant index_map keeps the (small) weights resident across the grid.
        return pl.BlockSpec(shape, lambda g: (0,) * len(shape))

    weight_specs = [w_spec((D, Rp)), w_spec((1, Rp)),
                    w_spec((D, Rp)), w_spec((1, Rp)),
                    w_spec((D, Rp)), w_spec((1, Rp)),
                    w_spec((Rp, Op)), w_spec((Rp, Op)), w_spec((Rp, Op)),
                    w_spec((1, Op))]

    if use_bd:
        # Pack each group of tb adjacencies into one block-diagonal [M, M] bf16
        # matrix (zero off-blocks don't affect norms or aggregation), so each
        # grid step does one big MXU matmul per aggregation instead of tb tiny ones.
        adj_g = adj_bf.reshape(G, tb, N, N)
        eye = jnp.eye(tb, dtype=_BF16)
        bd = adj_g[:, :, None, :, :] * eye[None, :, :, None, None]      # [G,tb,tb,N,N]
        adj_in = bd.transpose(0, 1, 3, 2, 4).reshape(G * M, M)
        kernel = _make_blockdiag_kernel(M)
        adj_spec = pl.BlockSpec((M, M), lambda g: (g, 0))
        scratch = []
    else:
        adj_in = adj_bf
        kernel = _make_batched_kernel(tb, N)
        adj_spec = pl.BlockSpec((tb, N, N), lambda g: (g, 0, 0))
        scratch = [pltpu.VMEM((M, Rp), _BF16),
                   pltpu.VMEM((M, Rp), _BF16)]

    # TODO(synk): for N so large that even a tb=1 adjacency block exceeds the
    # VMEM budget (N >~ 2900 on v7x), tile the aggregation over an extra inner
    # "arbitrary" grid axis accumulating into VMEM scratch.
    out_padded = pl.pallas_call(
        kernel,
        out_shape=jax.ShapeDtypeStruct((B * N, Op), jnp.float32),
        grid_spec=pltpu.PrefetchScalarGridSpec(
            num_scalar_prefetch=0,
            grid=(G,),
            in_specs=[pl.BlockSpec((M, D), lambda g: (g, 0)),   # nodes (bf16, folded)
                      adj_spec] + weight_specs,
            out_specs=pl.BlockSpec((M, Op), lambda g: (g, 0)),
            scratch_shapes=scratch),
        compiler_params=pltpu.CompilerParams(
            dimension_semantics=("parallel",),
            vmem_limit_bytes=vmem_limit),
    )(nodes_2d, adj_in, *weight_args)

    return out_padded[:, :out_dim].reshape(B, N, out_dim)


def _pad2(x, rows, cols):
    return jnp.pad(x, ((0, rows - x.shape[0]), (0, cols - x.shape[1])))


def init_params(key, input_dim, rep, out_dim):
    """PyTorch-Linear-style init U(-1/sqrt(fan_in), 1/sqrt(fan_in)) + kernel repack."""
    ks = jax.random.split(key, 8)

    def lin(kw, kb, fan_in, fan_out):
        bound = 1.0 / float(fan_in) ** 0.5
        w = jax.random.uniform(kw, (fan_out, fan_in), jnp.float32, -bound, bound)
        b = jax.random.uniform(kb, (fan_out,), jnp.float32, -bound, bound)
        return w, b

    w_src, b_src = lin(ks[0], ks[1], input_dim, rep)
    w_dst, b_dst = lin(ks[2], ks[3], input_dim, rep)
    w_self, b_self = lin(ks[4], ks[5], input_dim, rep)
    w_upd, b_upd = lin(ks[6], ks[7], 3 * rep, out_dim)

    torch_params = dict(w_src=w_src, b_src=b_src, w_dst=w_dst, b_dst=b_dst,
                        w_self=w_self, b_self=b_self, w_upd=w_upd, b_upd=b_upd)

    rp = _round_up(rep, _LANE)
    op = _round_up(out_dim, _LANE)

    # Kernel-friendly: weights transposed to [in, out], node_update split into 3
    # column blocks (concat + matmul == sum of block matmuls), zero-padded to
    # lane-dense widths (R->Rp, O->Op). Matmul operands bf16, biases f32.
    kernel_params = dict(
        w_src=_pad2(w_src.T, input_dim, rp).astype(_BF16),
        b_src=_pad2(b_src.reshape(1, rep), 1, rp),
        w_dst=_pad2(w_dst.T, input_dim, rp).astype(_BF16),
        b_dst=_pad2(b_dst.reshape(1, rep), 1, rp),
        w_self=_pad2(w_self.T, input_dim, rp).astype(_BF16),
        b_self=_pad2(b_self.reshape(1, rep), 1, rp),
        w_u_src=_pad2(w_upd[:, :rep].T, rp, op).astype(_BF16),
        w_u_self=_pad2(w_upd[:, rep:2 * rep].T, rp, op).astype(_BF16),
        w_u_dst=_pad2(w_upd[:, 2 * rep:].T, rp, op).astype(_BF16),
        b_u=_pad2(b_upd.reshape(1, out_dim), 1, op),
    )
    return torch_params, kernel_params


def reference_forward(nodes, adj, p):
    """Pure-JAX (f32) replica of the PyTorch forward for validation."""
    eps = 1e-12
    src = nodes @ p["w_src"].T + p["b_src"]
    conn = adj / jnp.maximum(jnp.linalg.norm(adj, axis=2, keepdims=True), eps)
    src = jnp.einsum('bjv,bij->biv', src, conn)
    dst = nodes @ p["w_dst"].T + p["b_dst"]
    conn = adj / jnp.maximum(jnp.linalg.norm(adj, axis=1, keepdims=True), eps)
    dst = jnp.einsum('bjv,bji->biv', dst, conn)
    slf = nodes @ p["w_self"].T + p["b_self"]
    cat = jnp.concatenate([src, slf, dst], axis=2)
    return jax.nn.relu(cat @ p["w_upd"].T + p["b_upd"])


if __name__ == "__main__":
    B, N, D = 8, 8, 16          # batch, num nodes, input_dim
    R, O = 32, 8                # representation_size, output_dim

    key = jax.random.PRNGKey(0)
    k_nodes, k_adj, k_params = jax.random.split(key, 3)

    nodes = jax.random.normal(k_nodes, (B, N, D), jnp.float32)
    adj = (jax.random.uniform(k_adj, (B, N, N), jnp.float32) > 0.5).astype(jnp.float32)

    torch_params, kernel_params = init_params(k_params, D, R, O)

    out = graphsage_forward(nodes, adj, kernel_params, O)
    out = jax.block_until_ready(out)

    ref = reference_forward(nodes, adj, torch_params)
    assert out.shape == (B, N, O)
    max_err = jnp.max(jnp.abs(out - ref))
    # bf16 MXU operands vs. f32 reference -> looser tolerance than a pure-f32 kernel.
    assert jnp.allclose(out, ref, atol=5e-2, rtol=5e-2), f"mismatch: max abs err {max_err}"

    print("KERNEL_OK")
</pallas_src>

<mosaic_0001>
module attributes {stable_mosaic.version = 11 : i64} {
  func.func @kernel(%arg0: i32, %arg1: memref<16x16xbf16, #tpu.memory_space<vmem>>, %arg2: memref<16x16xbf16, #tpu.memory_space<vmem>>, %arg3: memref<16x128xbf16, #tpu.memory_space<vmem>>, %arg4: memref<1x128xf32, #tpu.memory_space<vmem>>, %arg5: memref<16x128xbf16, #tpu.memory_space<vmem>>, %arg6: memref<1x128xf32, #tpu.memory_space<vmem>>, %arg7: memref<16x128xbf16, #tpu.memory_space<vmem>>, %arg8: memref<1x128xf32, #tpu.memory_space<vmem>>, %arg9: memref<128x128xbf16, #tpu.memory_space<vmem>>, %arg10: memref<128x128xbf16, #tpu.memory_space<vmem>>, %arg11: memref<128x128xbf16, #tpu.memory_space<vmem>>, %arg12: memref<1x128xf32, #tpu.memory_space<vmem>>, %arg13: memref<16x128xf32, #tpu.memory_space<vmem>>) attributes {dimension_semantics = [#tpu.dimension_semantics<parallel>], iteration_bounds = array<i64: 4>, scalar_prefetch = 0 : i64, scratch_operands = 0 : i64, tpu.core_type = #tpu.core_type<tc>, window_params = [{transform_indices = @transform_0, window_bounds = array<i64: 16, 16>}, {transform_indices = @transform_1, window_bounds = array<i64: 16, 16>}, {pipeline_mode = #tpu.pipeline_mode<synchronous>, transform_indices = @transform_2, window_bounds = array<i64: 16, 128>}, {pipeline_mode = #tpu.pipeline_mode<synchronous>, transform_indices = @transform_3, window_bounds = array<i64: 1, 128>}, {pipeline_mode = #tpu.pipeline_mode<synchronous>, transform_indices = @transform_4, window_bounds = array<i64: 16, 128>}, {pipeline_mode = #tpu.pipeline_mode<synchronous>, transform_indices = @transform_5, window_bounds = array<i64: 1, 128>}, {pipeline_mode = #tpu.pipeline_mode<synchronous>, transform_indices = @transform_6, window_bounds = array<i64: 16, 128>}, {pipeline_mode = #tpu.pipeline_mode<synchronous>, transform_indices = @transform_7, window_bounds = array<i64: 1, 128>}, {pipeline_mode = #tpu.pipeline_mode<synchronous>, transform_indices = @transform_8, window_bounds = array<i64: 128, 128>}, {pipeline_mode = #tpu.pipeline_mode<synchronous>, transform_indices = @transform_9, window_bounds = array<i64: 128, 128>}, {pipeline_mode = #tpu.pipeline_mode<synchronous>, transform_indices = @transform_10, window_bounds = array<i64: 128, 128>}, {pipeline_mode = #tpu.pipeline_mode<synchronous>, transform_indices = @transform_11, window_bounds = array<i64: 1, 128>}, {transform_indices = @transform_12, window_bounds = array<i64: 16, 128>}]} {
    %c0 = arith.constant 0 : index
    %c0_0 = arith.constant 0 : index
    %0 = vector.load %arg1[%c0, %c0_0] : memref<16x16xbf16, #tpu.memory_space<vmem>>, vector<16x16xbf16>
    %c0_1 = arith.constant 0 : index
    %c0_2 = arith.constant 0 : index
    %1 = vector.load %arg3[%c0_1, %c0_2] : memref<16x128xbf16, #tpu.memory_space<vmem>>, vector<16x128xbf16>
    %cst = arith.constant dense<0.000000e+00> : vector<16x128xf32>
    %2 = tpu.matmul %0, %1, %cst {dimension_numbers = #tpu.dot_dimension_numbers<[1], [0], [0], [1], [0, 0, 1, 1], [], []>} : vector<16x16xbf16>, vector<16x128xbf16>, vector<16x128xf32> -> vector<16x128xf32>
    %c0_3 = arith.constant 0 : index
    %c0_4 = arith.constant 0 : index
    %3 = vector.load %arg4[%c0_3, %c0_4] : memref<1x128xf32, #tpu.memory_space<vmem>>, vector<1x128xf32>
    %4 = vector.broadcast %3 : vector<1x128xf32> to vector<16x128xf32>
    %5 = arith.addf %2, %4 : vector<16x128xf32>
    %6 = arith.truncf %5 : vector<16x128xf32> to vector<16x128xbf16>
    %c0_5 = arith.constant 0 : index
    %c0_6 = arith.constant 0 : index
    %7 = vector.load %arg5[%c0_5, %c0_6] : memref<16x128xbf16, #tpu.memory_space<vmem>>, vector<16x128xbf16>
    %cst_7 = arith.constant dense<0.000000e+00> : vector<16x128xf32>
    %8 = tpu.matmul %0, %7, %cst_7 {dimension_numbers = #tpu.dot_dimension_numbers<[1], [0], [0], [1], [0, 0, 1, 1], [], []>} : vector<16x16xbf16>, vector<16x128xbf16>, vector<16x128xf32> -> vector<16x128xf32>
    %c0_8 = arith.constant 0 : index
    %c0_9 = arith.constant 0 : index
    %9 = vector.load %arg6[%c0_8, %c0_9] : memref<1x128xf32, #tpu.memory_space<vmem>>, vector<1x128xf32>
    %10 = vector.broadcast %9 : vector<1x128xf32> to vector<16x128xf32>
    %11 = arith.addf %8, %10 : vector<16x128xf32>
    %12 = arith.truncf %11 : vector<16x128xf32> to vector<16x128xbf16>
    %c0_10 = arith.constant 0 : index
    %c0_11 = arith.constant 0 : index
    %13 = vector.load %arg2[%c0_10, %c0_11] : memref<16x16xbf16, #tpu.memory_space<vmem>>, vector<16x16xbf16>
    %14 = arith.extf %13 : vector<16x16xbf16> to vector<16x16xf32>
    %15 = arith.mulf %14, %14 : vector<16x16xf32>
    %cst_12 = arith.constant dense<0.000000e+00> : vector<16xf32>
    %16 = vector.multi_reduction <add>, %15, %cst_12 [1] : vector<16x16xf32> to vector<16xf32>
    %17 = vector.shape_cast %16 : vector<16xf32> to vector<16x1xf32>
    %cst_13 = arith.constant 1.000000e-24 : f32
    %18 = vector.broadcast %cst_13 : f32 to vector<16x1xf32>
    %19 = arith.maximumf %17, %18 : vector<16x1xf32>
    %20 = math.rsqrt %19 : vector<16x1xf32>
    %cst_14 = arith.constant 1.000000e+00 : bf16
    %21 = vector.broadcast %cst_14 : bf16 to vector<16x128xbf16>
    %22 = arith.truncf %15 : vector<16x16xf32> to vector<16x16xbf16>
    %cst_15 = arith.constant dense<0.000000e+00> : vector<16x128xf32>
    %23 = tpu.matmul %22, %21, %cst_15 {dimension_numbers = #tpu.dot_dimension_numbers<[0], [0], [1], [1], [0, 1, 1, 1], [], []>} : vector<16x16xbf16>, vector<16x128xbf16>, vector<16x128xf32> -> vector<16x128xf32>
    %24 = vector.extract_strided_slice %23 {offsets = [0, 0], sizes = [16, 1], strides = [1, 1]} : vector<16x128xf32> to vector<16x1xf32>
    %cst_16 = arith.constant 1.000000e-24 : f32
    %25 = vector.broadcast %cst_16 : f32 to vector<16x1xf32>
    %26 = arith.maximumf %24, %25 : vector<16x1xf32>
    %27 = math.rsqrt %26 : vector<16x1xf32>
    %cst_17 = arith.constant dense<0.000000e+00> : vector<16x128xf32>
    %28 = tpu.matmul %13, %6, %cst_17 {dimension_numbers = #tpu.dot_dimension_numbers<[1], [0], [0], [1], [0, 0, 1, 1], [], []>} : vector<16x16xbf16>, vector<16x128xbf16>, vector<16x128xf32> -> vector<16x128xf32>
    %29 = vector.broadcast %20 : vector<16x1xf32> to vector<16x128xf32>
    %30 = arith.mulf %28, %29 : vector<16x128xf32>
    %31 = arith.truncf %30 : vector<16x128xf32> to vector<16x128xbf16>
    %cst_18 = arith.constant dense<0.000000e+00> : vector<16x128xf32>
    %32 = tpu.matmul %13, %12, %cst_18 {dimension_numbers = #tpu.dot_dimension_numbers<[0], [0], [1], [1], [0, 1, 1, 1], [], []>} : vector<16x16xbf16>, vector<16x128xbf16>, vector<16x128xf32> -> vector<16x128xf32>
    %33 = vector.broadcast %27 : vector<16x1xf32> to vector<16x128xf32>
    %34 = arith.mulf %32, %33 : vector<16x128xf32>
    %35 = arith.truncf %34 : vector<16x128xf32> to vector<16x128xbf16>
    %c0_19 = arith.constant 0 : index
    %c0_20 = arith.constant 0 : index
    %36 = vector.load %arg7[%c0_19, %c0_20] : memref<16x128xbf16, #tpu.memory_space<vmem>>, vector<16x128xbf16>
    %cst_21 = arith.constant dense<0.000000e+00> : vector<16x128xf32>
    %37 = tpu.matmul %0, %36, %cst_21 {dimension_numbers = #tpu.dot_dimension_numbers<[1], [0], [0], [1], [0, 0, 1, 1], [], []>} : vector<16x16xbf16>, vector<16x128xbf16>, vector<16x128xf32> -> vector<16x128xf32>
    %c0_22 = arith.constant 0 : index
    %c0_23 = arith.constant 0 : index
    %38 = vector.load %arg8[%c0_22, %c0_23] : memref<1x128xf32, #tpu.memory_space<vmem>>, vector<1x128xf32>
    %39 = vector.broadcast %38 : vector<1x128xf32> to vector<16x128xf32>
    %40 = arith.addf %37, %39 : vector<16x128xf32>
    %c0_24 = arith.constant 0 : index
    %c0_25 = arith.constant 0 : index
    %41 = vector.load %arg9[%c0_24, %c0_25] : memref<128x128xbf16, #tpu.memory_space<vmem>>, vector<128x128xbf16>
    %cst_26 = arith.constant dense<0.000000e+00> : vector<16x128xf32>
    %42 = tpu.matmul %31, %41, %cst_26 {dimension_numbers = #tpu.dot_dimension_numbers<[1], [0], [0], [1], [0, 0, 1, 1], [], []>} : vector<16x128xbf16>, vector<128x128xbf16>, vector<16x128xf32> -> vector<16x128xf32>
    %43 = arith.truncf %40 : vector<16x128xf32> to vector<16x128xbf16>
    %c0_27 = arith.constant 0 : index
    %c0_28 = arith.constant 0 : index
    %44 = vector.load %arg10[%c0_27, %c0_28] : memref<128x128xbf16, #tpu.memory_space<vmem>>, vector<128x128xbf16>
    %cst_29 = arith.constant dense<0.000000e+00> : vector<16x128xf32>
    %45 = tpu.matmul %43, %44, %cst_29 {dimension_numbers = #tpu.dot_dimension_numbers<[1], [0], [0], [1], [0, 0, 1, 1], [], []>} : vector<16x128xbf16>, vector<128x128xbf16>, vector<16x128xf32> -> vector<16x128xf32>
    %46 = arith.addf %42, %45 : vector<16x128xf32>
    %c0_30 = arith.constant 0 : index
    %c0_31 = arith.constant 0 : index
    %47 = vector.load %arg11[%c0_30, %c0_31] : memref<128x128xbf16, #tpu.memory_space<vmem>>, vector<128x128xbf16>
    %cst_32 = arith.constant dense<0.000000e+00> : vector<16x128xf32>
    %48 = tpu.matmul %35, %47, %cst_32 {dimension_numbers = #tpu.dot_dimension_numbers<[1], [0], [0], [1], [0, 0, 1, 1], [], []>} : vector<16x128xbf16>, vector<128x128xbf16>, vector<16x128xf32> -> vector<16x128xf32>
    %49 = arith.addf %46, %48 : vector<16x128xf32>
    %c0_33 = arith.constant 0 : index
    %c0_34 = arith.constant 0 : index
    %50 = vector.load %arg12[%c0_33, %c0_34] : memref<1x128xf32, #tpu.memory_space<vmem>>, vector<1x128xf32>
    %51 = vector.broadcast %50 : vector<1x128xf32> to vector<16x128xf32>
    %52 = arith.addf %49, %51 : vector<16x128xf32>
    %cst_35 = arith.constant 0.000000e+00 : f32
    %53 = vector.broadcast %cst_35 : f32 to vector<16x128xf32>
    %54 = arith.maximumf %52, %53 : vector<16x128xf32>
    %c0_36 = arith.constant 0 : index
    %c0_37 = arith.constant 0 : index
    %55 = vector.load %arg13[%c0_36, %c0_37] : memref<16x128xf32, #tpu.memory_space<vmem>>, vector<16x128xf32>
    tpu.vector_store %arg13[%c0_36, %c0_37], %54 {strides = array<i32>} : memref<16x128xf32, #tpu.memory_space<vmem>>, vector<16x128xf32>,
    return
  }
  func.func @transform_0(%arg0: i32) -> (i32, i32) {
    %c0_i32 = arith.constant 0 : i32
    %c0_i32_0 = arith.constant 0 : i32
    return %arg0, %c0_i32 : i32, i32
  }
  func.func @transform_1(%arg0: i32) -> (i32, i32) {
    %c0_i32 = arith.constant 0 : i32
    %c0_i32_0 = arith.constant 0 : i32
    return %arg0, %c0_i32 : i32, i32
  }
  func.func @transform_2(%arg0: i32) -> (i32, i32) {
    %c0_i32 = arith.constant 0 : i32
    %c0_i32_0 = arith.constant 0 : i32
    %c0_i32_1 = arith.constant 0 : i32
    return %c0_i32, %c0_i32_0 : i32, i32
  }
  func.func @transform_3(%arg0: i32) -> (i32, i32) {
    %c0_i32 = arith.constant 0 : i32
    %c0_i32_0 = arith.constant 0 : i32
    %c0_i32_1 = arith.constant 0 : i32
    return %c0_i32, %c0_i32_0 : i32, i32
  }
  func.func @transform_4(%arg0: i32) -> (i32, i32) {
    %c0_i32 = arith.constant 0 : i32
    %c0_i32_0 = arith.constant 0 : i32
    %c0_i32_1 = arith.constant 0 : i32
    return %c0_i32, %c0_i32_0 : i32, i32
  }
  func.func @transform_5(%arg0: i32) -> (i32, i32) {
    %c0_i32 = arith.constant 0 : i32
    %c0_i32_0 = arith.constant 0 : i32
    %c0_i32_1 = arith.constant 0 : i32
    return %c0_i32, %c0_i32_0 : i32, i32
  }
  func.func @transform_6(%arg0: i32) -> (i32, i32) {
    %c0_i32 = arith.constant 0 : i32
    %c0_i32_0 = arith.constant 0 : i32
    %c0_i32_1 = arith.constant 0 : i32
    return %c0_i32, %c0_i32_0 : i32, i32
  }
  func.func @transform_7(%arg0: i32) -> (i32, i32) {
    %c0_i32 = arith.constant 0 : i32
    %c0_i32_0 = arith.constant 0 : i32
    %c0_i32_1 = arith.constant 0 : i32
    return %c0_i32, %c0_i32_0 : i32, i32
  }
  func.func @transform_8(%arg0: i32) -> (i32, i32) {
    %c0_i32 = arith.constant 0 : i32
    %c0_i32_0 = arith.constant 0 : i32
    %c0_i32_1 = arith.constant 0 : i32
    return %c0_i32, %c0_i32_0 : i32, i32
  }
  func.func @transform_9(%arg0: i32) -> (i32, i32) {
    %c0_i32 = arith.constant 0 : i32
    %c0_i32_0 = arith.constant 0 : i32
    %c0_i32_1 = arith.constant 0 : i32
    return %c0_i32, %c0_i32_0 : i32, i32
  }
  func.func @transform_10(%arg0: i32) -> (i32, i32) {
    %c0_i32 = arith.constant 0 : i32
    %c0_i32_0 = arith.constant 0 : i32
    %c0_i32_1 = arith.constant 0 : i32
    return %c0_i32, %c0_i32_0 : i32, i32
  }
  func.func @transform_11(%arg0: i32) -> (i32, i32) {
    %c0_i32 = arith.constant 0 : i32
    %c0_i32_0 = arith.constant 0 : i32
    %c0_i32_1 = arith.constant 0 : i32
    return %c0_i32, %c0_i32_0 : i32, i32
  }
  func.func @transform_12(%arg0: i32) -> (i32, i32) {
    %c0_i32 = arith.constant 0 : i32
    %c0_i32_0 = arith.constant 0 : i32
    return %arg0, %c0_i32 : i32, i32
  }
}

</mosaic_0001>

<llo_original>
// kernel: tpu_custom_call.1
$region0: #{tpu_custom_call.1}
  #allocation0 [shape = 'u32[]', space=smem, size = 0x4, offset = 0x4, fixed_abs, tag = 'smem constant byte address 0x4 - core index']
  #allocation1 [shape = 'u32[72,128]{1,0:T(1,128)}', space=vmem, size = 0x9000, scoped, tag = 'internal scratch']
  %s0 = inlined_call_operand.vmem [shape: bf16[64,16], index: 0, kind: input, shape index: {}]
  %s1 = inlined_call_operand.vmem [shape: bf16[64,16], index: 1, kind: input, shape index: {}]
  %s2 = inlined_call_operand.vmem [shape: bf16[16,128], index: 2, kind: input, shape index: {}]
  %s3 = inlined_call_operand.vmem [shape: f32[1,128], index: 3, kind: input, shape index: {}]
  %s4 = inlined_call_operand.hbm [shape: bf16[16,128], index: 4, kind: input, shape index: {}]
  %s5 = inlined_call_operand.vmem [shape: f32[1,128], index: 5, kind: input, shape index: {}]
  %s6 = inlined_call_operand.hbm [shape: bf16[16,128], index: 6, kind: input, shape index: {}]
  %s7 = inlined_call_operand.vmem [shape: f32[1,128], index: 7, kind: input, shape index: {}]
  %s8 = inlined_call_operand.vmem [shape: bf16[128,128], index: 8, kind: input, shape index: {}]
  %s9 = inlined_call_operand.hbm [shape: bf16[128,128], index: 9, kind: input, shape index: {}]
  %s10 = inlined_call_operand.hbm [shape: bf16[128,128], index: 10, kind: input, shape index: {}]
  %s11 = inlined_call_operand.vmem [shape: f32[1,128], index: 11, kind: input, shape index: {}]
  %s12 = inlined_call_operand.hbm [shape: f32[64,128], index: 12, kind: output, shape index: {}]
  %s13 = sld [smem:[#allocation0]]
  $region97: #{tpu_custom_call.1} parent=0
    _
  %s15 = ssub.s32 1, %s13
  %s16 = scalar_select 0, %s15, %s13
  $region1: #{tpu_custom_call.1} parent=0
    #allocation2 [shape = 'u8[4096]{0}', space=vmem, size = 0x1000, scoped, tag = 'input window, operand 4, single buffered']
    #allocation3 [shape = 's32[2]{0}', space=sflag, size = 0x8, scoped, tag = 'scoped memory for tpu_custom_call.1']
    #allocation4 [shape = 's32[2]{0}', space=sflag, size = 0x8, scoped, tag = 'scoped memory for tpu_custom_call.1']
    #allocation5 [shape = 'u8[4096]{0}', space=vmem, size = 0x1000, scoped, tag = 'input window, operand 6, single buffered']
    #allocation6 [shape = 's32[1]{0}', space=sflag, size = 0x4, scoped, tag = 'scoped memory for tpu_custom_call.1']
    #allocation7 [shape = 'u8[32768]{0}', space=vmem, size = 0x8000, scoped, tag = 'input window, operand 9, single buffered']
    #allocation8 [shape = 'u8[32768]{0}', space=vmem, size = 0x8000, scoped, tag = 'input window, operand 10, single buffered']
    #allocation9 [shape = 's32[1]{0}', space=sflag, size = 0x4, scoped, tag = 'scoped memory for tpu_custom_call.1']
    #allocation10 [shape = 'u8[16384]{0}', space=vmem, size = 0x4000, scoped, tag = 'output window, operand 0']
    %17 = vsyncpa [#allocation3], 0
    %18 = vsyncpa [#allocation6], 0
    %19 = vsyncpa [#allocation9], 0
    %20 = vsyncpa [#allocation4], 0
    %s21 = scalar_lea.sflag [#allocation4], 1
    %22 = vsyncpa %s21, 0
    loop: start=0, step=1, limit=6
    $region2: #{tpu_custom_call.1} parent=1 // loop_pre_header
      _
    $region3: #{tpu_custom_call.1} parent=1 // loop_header
      %s24 = sphi 0, %s28
      %p25 = scmp.ge.s32.totalorder %s24, 6
      %s34 = sphi 0, %s36
      %s37 = sphi 0, %s34
      %s38 = sphi 0, %s37
      %s54 = sphi 0, %s38
      %s60 = sphi 0, %s62
      %s63 = sphi 0, %s60
      %s64 = sphi 0, %s63
      %s80 = sphi 0, %s64
      %s84 = sphi 0, %s84
      %s86 = sphi 0, %s84
      %s87 = sphi 0, %s86
      %s101 = sphi 0, %s87
      %s105 = sphi 0, %s105
      %s107 = sphi 0, %s105
      %s108 = sphi 0, %s107
      %s122 = sphi 0, %s108
      %s126 = sphi 0, %s126
      %s128 = sphi 0, %s126
      %s129 = sphi 0, %s128
      %s143 = sphi 0, %s129
      %s147 = sphi 0, %s147
      %s149 = sphi 0, %s147
      %s150 = sphi 0, %s149
      %s164 = sphi 0, %s150
      %s168 = sphi 0, %s168
      %s170 = sphi 0, %s168
      %s171 = sphi 0, %s170
      %s185 = sphi 0, %s171
      %s189 = sphi 0, %s189
      %s191 = sphi 0, %s189
      %s192 = sphi 0, %s191
      %s206 = sphi 0, %s192
      %s210 = sphi 0, %s210
      %s212 = sphi 0, %s210
      %s213 = sphi 0, %s212
      %s227 = sphi 0, %s213
      %s231 = sphi 0, %s231
      %s233 = sphi 0, %s231
      %s234 = sphi 0, %s233
      %s248 = sphi 0, %s234
      %s252 = sphi 0, %s252
      %s254 = sphi 0, %s252
      %s255 = sphi 0, %s254
      %s269 = sphi 0, %s255
      %s273 = sphi 0, %s273
      %s275 = sphi 0, %s273
      %s276 = sphi 0, %s275
      %s290 = sphi 0, %s276
      %s296 = sphi 0, %s298
      %s299 = sphi 0, %s296
      %s300 = sphi 0, %s299
      %s316 = sphi 0, %s300
    $region4: #{tpu_custom_call.1} parent=1 // loop_header_branch
      %27 = sbr.rel (%p25) target = $region8
    $region5: #{tpu_custom_call.1} parent=1 // loop_body
      %s29 = ssub.s32 %s24, 1
      %s30 = ssub.s32 %s24, 2
      %s31 = sadd.s32 %s24, 1
      %s32 = ssub.s32 %s24, %s31
      %p33 = scmp.eq.s32.totalorder %s32, 0
      %s35 = sadd.s32 %s34, 1
      %s36 = scalar_select %p33, %s34, %s35
      %p39 = pneg %p33
      %p40 = scmp.eq.s32.totalorder %s24, 3
      %p41 = por %p39, %p40
      %p42 = scmp.ne.s32.totalorder %s34, %s37
      %p43 = scmp.eq.s32.totalorder %s24, 0
      %p44 = por %p42, %p43
      %p45 = scmp.ne.s32.totalorder %s34, %s37
      %p46 = scmp.eq.s32.totalorder %s29, 3
      %p47 = por %p45, %p46
      %p48 = scmp.ne.s32.totalorder %s37, %s38
      %p49 = scmp.eq.s32.totalorder %s29, 0
      %p50 = por %p48, %p49
      %p51 = scmp.ne.s32.totalorder %s37, %s38
      %p52 = scmp.eq.s32.totalorder %s30, 3
      %p53 = por %p51, %p52
      %p55 = scmp.ne.s32.totalorder %s38, %s54
      %p56 = scmp.eq.s32.totalorder %s30, 0
      %p57 = por %p55, %p56
      %s58 = ssub.s32 %s24, %s31
      %p59 = scmp.eq.s32.totalorder %s58, 0
      %s61 = sadd.s32 %s60, 1
      %s62 = scalar_select %p59, %s60, %s61
      %p65 = pneg %p59
      %p66 = scmp.eq.s32.totalorder %s24, 3
      %p67 = por %p65, %p66
      %p68 = scmp.ne.s32.totalorder %s60, %s63
      %p69 = scmp.eq.s32.totalorder %s24, 0
      %p70 = por %p68, %p69
      %p71 = scmp.ne.s32.totalorder %s60, %s63
      %p72 = scmp.eq.s32.totalorder %s29, 3
      %p73 = por %p71, %p72
      %p74 = scmp.ne.s32.totalorder %s63, %s64
      %p75 = scmp.eq.s32.totalorder %s29, 0
      %p76 = por %p74, %p75
      %p77 = scmp.ne.s32.totalorder %s63, %s64
      %p78 = scmp.eq.s32.totalorder %s30, 3
      %p79 = por %p77, %p78
      %p81 = scmp.ne.s32.totalorder %s64, %s80
      %p82 = scmp.eq.s32.totalorder %s30, 0
      %p83 = por %p81, %p82
      %s85 = sadd.s32 %s84, 1
      %p88 = scmp.eq.s32.totalorder %s24, 3
      %p89 = scmp.ne.s32.totalorder %s84, %s86
      %p90 = scmp.eq.s32.totalorder %s24, 0
      %p91 = por %p89, %p90
      %p92 = scmp.ne.s32.totalorder %s84, %s86
      %p93 = scmp.eq.s32.totalorder %s29, 3
      %p94 = por %p92, %p93
      %p95 = scmp.ne.s32.totalorder %s86, %s87
      %p96 = scmp.eq.s32.totalorder %s29, 0
      %p97 = por %p95, %p96
      %p98 = scmp.ne.s32.totalorder %s86, %s87
      %p99 = scmp.eq.s32.totalorder %s30, 3
      %p100 = por %p98, %p99
      %p102 = scmp.ne.s32.totalorder %s87, %s101
      %p103 = scmp.eq.s32.totalorder %s30, 0
      %p104 = por %p102, %p103
      %s106 = sadd.s32 %s105, 1
      %p109 = scmp.eq.s32.totalorder %s24, 3
      %p110 = scmp.ne.s32.totalorder %s105, %s107
      %p111 = scmp.eq.s32.totalorder %s24, 0
      %p112 = por %p110, %p111
      %p113 = scmp.ne.s32.totalorder %s105, %s107
      %p114 = scmp.eq.s32.totalorder %s29, 3
      %p115 = por %p113, %p114
      %p116 = scmp.ne.s32.totalorder %s107, %s108
      %p117 = scmp.eq.s32.totalorder %s29, 0
      %p118 = por %p116, %p117
      %p119 = scmp.ne.s32.totalorder %s107, %s108
      %p120 = scmp.eq.s32.totalorder %s30, 3
      %p121 = por %p119, %p120
      %p123 = scmp.ne.s32.totalorder %s108, %s122
      %p124 = scmp.eq.s32.totalorder %s30, 0
      %p125 = por %p123, %p124
      %s127 = sadd.s32 %s126, 1
      %p130 = scmp.eq.s32.totalorder %s24, 3
      %p131 = scmp.ne.s32.totalorder %s126, %s128
      %p132 = scmp.eq.s32.totalorder %s24, 0
      %p133 = por %p131, %p132
      %p134 = scmp.ne.s32.totalorder %s126, %s128
      %p135 = scmp.eq.s32.totalorder %s29, 3
      %p136 = por %p134, %p135
      %p137 = scmp.ne.s32.totalorder %s128, %s129
      %p138 = scmp.eq.s32.totalorder %s29, 0
      %p139 = por %p137, %p138
      %p140 = scmp.ne.s32.totalorder %s128, %s129
      %p141 = scmp.eq.s32.totalorder %s30, 3
      %p142 = por %p140, %p141
      %p144 = scmp.ne.s32.totalorder %s129, %s143
      %p145 = scmp.eq.s32.totalorder %s30, 0
      %p146 = por %p144, %p145
      %s148 = sadd.s32 %s147, 1
      %p151 = scmp.eq.s32.totalorder %s24, 3
      %p152 = scmp.ne.s32.totalorder %s147, %s149
      %p153 = scmp.eq.s32.totalorder %s24, 0
      %p154 = por %p152, %p153
      %p155 = scmp.ne.s32.totalorder %s147, %s149
      %p156 = scmp.eq.s32.totalorder %s29, 3
      %p157 = por %p155, %p156
      %p158 = scmp.ne.s32.totalorder %s149, %s150
      %p159 = scmp.eq.s32.totalorder %s29, 0
      %p160 = por %p158, %p159
      %p161 = scmp.ne.s32.totalorder %s149, %s150
      %p162 = scmp.eq.s32.totalorder %s30, 3
      %p163 = por %p161, %p162
      %p165 = scmp.ne.s32.totalorder %s150, %s164
      %p166 = scmp.eq.s32.totalorder %s30, 0
      %p167 = por %p165, %p166
      %s169 = sadd.s32 %s168, 1
      %p172 = scmp.eq.s32.totalorder %s24, 3
      %p173 = scmp.ne.s32.totalorder %s168, %s170
      %p174 = scmp.eq.s32.totalorder %s24, 0
      %p175 = por %p173, %p174
      %p176 = scmp.ne.s32.totalorder %s168, %s170
      %p177 = scmp.eq.s32.totalorder %s29, 3
      %p178 = por %p176, %p177
      %p179 = scmp.ne.s32.totalorder %s170, %s171
      %p180 = scmp.eq.s32.totalorder %s29, 0
      %p181 = por %p179, %p180
      %p182 = scmp.ne.s32.totalorder %s170, %s171
      %p183 = scmp.eq.s32.totalorder %s30, 3
      %p184 = por %p182, %p183
      %p186 = scmp.ne.s32.totalorder %s171, %s185
      %p187 = scmp.eq.s32.totalorder %s30, 0
      %p188 = por %p186, %p187
      %s190 = sadd.s32 %s189, 1
      %p193 = scmp.eq.s32.totalorder %s24, 3
      %p194 = scmp.ne.s32.totalorder %s189, %s191
      %p195 = scmp.eq.s32.totalorder %s24, 0
      %p196 = por %p194, %p195
      %p197 = scmp.ne.s32.totalorder %s189, %s191
      %p198 = scmp.eq.s32.totalorder %s29, 3
      %p199 = por %p197, %p198
      %p200 = scmp.ne.s32.totalorder %s191, %s192
      %p201 = scmp.eq.s32.totalorder %s29, 0
      %p202 = por %p200, %p201
      %p203 = scmp.ne.s32.totalorder %s191, %s192
      %p204 = scmp.eq.s32.totalorder %s30, 3
      %p205 = por %p203, %p204
      %p207 = scmp.ne.s32.totalorder %s192, %s206
      %p208 = scmp.eq.s32.totalorder %s30, 0
      %p209 = por %p207, %p208
      %s211 = sadd.s32 %s210, 1
      %p214 = scmp.eq.s32.totalorder %s24, 3
      %p215 = scmp.ne.s32.totalorder %s210, %s212
      %p216 = scmp.eq.s32.totalorder %s24, 0
      %p217 = por %p215, %p216
      %p218 = scmp.ne.s32.totalorder %s210, %s212
      %p219 = scmp.eq.s32.totalorder %s29, 3
      %p220 = por %p218, %p219
      %p221 = scmp.ne.s32.totalorder %s212, %s213
      %p222 = scmp.eq.s32.totalorder %s29, 0
      %p223 = por %p221, %p222
      %p224 = scmp.ne.s32.totalorder %s212, %s213
      %p225 = scmp.eq.s32.totalorder %s30, 3
      %p226 = por %p224, %p225
      %p228 = scmp.ne.s32.totalorder %s213, %s227
      %p229 = scmp.eq.s32.totalorder %s30, 0
      %p230 = por %p228, %p229
      %s232 = sadd.s32 %s231, 1
      %p235 = scmp.eq.s32.totalorder %s24, 3
      %p236 = scmp.ne.s32.totalorder %s231, %s233
      %p237 = scmp.eq.s32.totalorder %s24, 0
      %p238 = por %p236, %p237
      %p239 = scmp.ne.s32.totalorder %s231, %s233
      %p240 = scmp.eq.s32.totalorder %s29, 3
      %p241 = por %p239, %p240
      %p242 = scmp.ne.s32.totalorder %s233, %s234
      %p243 = scmp.eq.s32.totalorder %s29, 0
      %p244 = por %p242, %p243
      %p245 = scmp.ne.s32.totalorder %s233, %s234
      %p246 = scmp.eq.s32.totalorder %s30, 3
      %p247 = por %p245, %p246
      %p249 = scmp.ne.s32.totalorder %s234, %s248
      %p250 = scmp.eq.s32.totalorder %s30, 0
      %p251 = por %p249, %p250
      %s253 = sadd.s32 %s252, 1
      %p256 = scmp.eq.s32.totalorder %s24, 3
      %p257 = scmp.ne.s32.totalorder %s252, %s254
      %p258 = scmp.eq.s32.totalorder %s24, 0
      %p259 = por %p257, %p258
      %p260 = scmp.ne.s32.totalorder %s252, %s254
      %p261 = scmp.eq.s32.totalorder %s29, 3
      %p262 = por %p260, %p261
      %p263 = scmp.ne.s32.totalorder %s254, %s255
      %p264 = scmp.eq.s32.totalorder %s29, 0
      %p265 = por %p263, %p264
      %p266 = scmp.ne.s32.totalorder %s254, %s255
      %p267 = scmp.eq.s32.totalorder %s30, 3
      %p268 = por %p266, %p267
      %p270 = scmp.ne.s32.totalorder %s255, %s269
      %p271 = scmp.eq.s32.totalorder %s30, 0
      %p272 = por %p270, %p271
      %s274 = sadd.s32 %s273, 1
      %p277 = scmp.eq.s32.totalorder %s24, 3
      %p278 = scmp.ne.s32.totalorder %s273, %s275
      %p279 = scmp.eq.s32.totalorder %s24, 0
      %p280 = por %p278, %p279
      %p281 = scmp.ne.s32.totalorder %s273, %s275
      %p282 = scmp.eq.s32.totalorder %s29, 3
      %p283 = por %p281, %p282
      %p284 = scmp.ne.s32.totalorder %s275, %s276
      %p285 = scmp.eq.s32.totalorder %s29, 0
      %p286 = por %p284, %p285
      %p287 = scmp.ne.s32.totalorder %s275, %s276
      %p288 = scmp.eq.s32.totalorder %s30, 3
      %p289 = por %p287, %p288
      %p291 = scmp.ne.s32.totalorder %s276, %s290
      %p292 = scmp.eq.s32.totalorder %s30, 0
      %p293 = por %p291, %p292
      %s294 = ssub.s32 %s24, %s31
      %p295 = scmp.eq.s32.totalorder %s294, 0
      %s297 = sadd.s32 %s296, 1
      %s298 = scalar_select %p295, %s296, %s297
      %p301 = pneg %p295
      %p302 = scmp.eq.s32.totalorder %s24, 3
      %p303 = por %p301, %p302
      %p304 = scmp.ne.s32.totalorder %s296, %s299
      %p305 = scmp.eq.s32.totalorder %s24, 0
      %p306 = por %p304, %p305
      %p307 = scmp.ne.s32.totalorder %s296, %s299
      %p308 = scmp.eq.s32.totalorder %s29, 3
      %p309 = por %p307, %p308
      %p310 = scmp.ne.s32.totalorder %s299, %s300
      %p311 = scmp.eq.s32.totalorder %s29, 0
      %p312 = por %p310, %p311
      %p313 = scmp.ne.s32.totalorder %s299, %s300
      %p314 = scmp.eq.s32.totalorder %s30, 3
      %p315 = por %p313, %p314
      %p317 = scmp.ne.s32.totalorder %s300, %s316
      %p318 = scmp.eq.s32.totalorder %s30, 0
      %p319 = por %p317, %p318
      %p320 = scmp.le.s32.totalorder 1, %s24
      %p321 = scmp.lt.s32.totalorder %s24, 5
      %p322 = pnand %p320, %p321
      %p323 = pneg %p322
      // Predicated region
      $region9: #{tpu_custom_call.1} parent=5 // pred_check
        _
      $region10: #{tpu_custom_call.1} parent=5 // pred_check_branch
        %325 = sbr.rel (%p322) target = $region12
      $region11: #{tpu_custom_call.1} parent=5 // pred_region
        %s326 = ssub.s32 %s24, 1
        // Predicated region
        $region13: #{tpu_custom_call.1} parent=11 // pred_check
          %p327 = pneg %p97
        $region14: #{tpu_custom_call.1} parent=11 // pred_check_branch
          %329 = sbr.rel (%p327) target = $region16
        $region15: #{tpu_custom_call.1} parent=11 // pred_region
          _
        $region16: #{tpu_custom_call.1} parent=11 // pred_fallthru
          _
        // Predicated region
        $region17: #{tpu_custom_call.1} parent=11 // pred_check
          %p330 = pneg %p118
        $region18: #{tpu_custom_call.1} parent=11 // pred_check_branch
          %332 = sbr.rel (%p330) target = $region20
        $region19: #{tpu_custom_call.1} parent=11 // pred_region
          _
        $region20: #{tpu_custom_call.1} parent=11 // pred_fallthru
          _
        // Predicated region
        $region21: #{tpu_custom_call.1} parent=11 // pred_check
          %p333 = pneg %p139
        $region22: #{tpu_custom_call.1} parent=11 // pred_check_branch
          %335 = sbr.rel (%p333) target = $region24
        $region23: #{tpu_custom_call.1} parent=11 // pred_region
          %337 = vsyncadd [#allocation3], 0
          %s338 = sshll.u32 %s4, 4
          %s339 = int_to_ptr.hbm [resolvable:$true] %s338
          %s340 = sshll.u32 [#allocation2], 4
          %s341 = int_to_ptr.vmem [resolvable:$true] %s340
          %346 = dma.hbm_to_vmem [thread:$0]  %s339, 128, %s341, [#allocation3], 64, 64, 4
        $region24: #{tpu_custom_call.1} parent=11 // pred_fallthru
          _
        // Predicated region
        $region25: #{tpu_custom_call.1} parent=11 // pred_check
          %p347 = pneg %p160
        $region26: #{tpu_custom_call.1} parent=11 // pred_check_branch
          %349 = sbr.rel (%p347) target = $region28
        $region27: #{tpu_custom_call.1} parent=11 // pred_region
          _
        $region28: #{tpu_custom_call.1} parent=11 // pred_fallthru
          _
        // Predicated region
        $region29: #{tpu_custom_call.1} parent=11 // pred_check
          %p350 = pneg %p181
        $region30: #{tpu_custom_call.1} parent=11 // pred_check_branch
          %352 = sbr.rel (%p350) target = $region32
        $region31: #{tpu_custom_call.1} parent=11 // pred_region
          %354 = vsyncadd [#allocation6], 0
          %s355 = sshll.u32 %s6, 4
          %s356 = int_to_ptr.hbm [resolvable:$true] %s355
          %s357 = sshll.u32 [#allocation5], 4
          %s358 = int_to_ptr.vmem [resolvable:$true] %s357
          %363 = dma.hbm_to_vmem [thread:$0]  %s356, 128, %s358, [#allocation6], 64, 64, 4
        $region32: #{tpu_custom_call.1} parent=11 // pred_fallthru
          _
        // Predicated region
        $region33: #{tpu_custom_call.1} parent=11 // pred_check
          %p364 = pneg %p202
        $region34: #{tpu_custom_call.1} parent=11 // pred_check_branch
          %366 = sbr.rel (%p364) target = $region36
        $region35: #{tpu_custom_call.1} parent=11 // pred_region
          _
        $region36: #{tpu_custom_call.1} parent=11 // pred_fallthru
          _
        // Predicated region
        $region37: #{tpu_custom_call.1} parent=11 // pred_check
          %p367 = pneg %p223
        $region38: #{tpu_custom_call.1} parent=11 // pred_check_branch
          %369 = sbr.rel (%p367) target = $region40
        $region39: #{tpu_custom_call.1} parent=11 // pred_region
          _
        $region40: #{tpu_custom_call.1} parent=11 // pred_fallthru
          _
        // Predicated region
        $region41: #{tpu_custom_call.1} parent=11 // pred_check
          %p370 = pneg %p244
        $region42: #{tpu_custom_call.1} parent=11 // pred_check_branch
          %372 = sbr.rel (%p370) target = $region44
        $region43: #{tpu_custom_call.1} parent=11 // pred_region
          %374 = vsyncadd [#allocation6], 0
          %s375 = sshll.u32 %s9, 4
          %s376 = int_to_ptr.hbm [resolvable:$true] %s375
          %s377 = sshll.u32 [#allocation7], 4
          %s378 = int_to_ptr.vmem [resolvable:$true] %s377
          %383 = dma.hbm_to_vmem [thread:$0]  %s376, 1024, %s378, [#allocation6], 64, 64, 4
        $region44: #{tpu_custom_call.1} parent=11 // pred_fallthru
          _
        // Predicated region
        $region45: #{tpu_custom_call.1} parent=11 // pred_check
          %p384 = pneg %p265
        $region46: #{tpu_custom_call.1} parent=11 // pred_check_branch
          %386 = sbr.rel (%p384) target = $region48
        $region47: #{tpu_custom_call.1} parent=11 // pred_region
          %388 = vsyncadd [#allocation9], 0
          %s389 = sshll.u32 %s10, 4
          %s390 = int_to_ptr.hbm [resolvable:$true] %s389
          %s391 = sshll.u32 [#allocation8], 4
          %s392 = int_to_ptr.vmem [resolvable:$true] %s391
          %397 = dma.hbm_to_vmem [thread:$0]  %s390, 1024, %s392, [#allocation9], 64, 64, 4
        $region48: #{tpu_custom_call.1} parent=11 // pred_fallthru
          _
        // Predicated region
        $region49: #{tpu_custom_call.1} parent=11 // pred_check
          %p398 = pneg %p286
        $region50: #{tpu_custom_call.1} parent=11 // pred_check_branch
          %400 = sbr.rel (%p398) target = $region52
        $region51: #{tpu_custom_call.1} parent=11 // pred_region
          _
        $region52: #{tpu_custom_call.1} parent=11 // pred_fallthru
          _
      $region12: #{tpu_custom_call.1} parent=5 // pred_fallthru
        _
      %p401 = scmp.lt.s32.totalorder %s24, 4
      // Predicated region
      $region53: #{tpu_custom_call.1} parent=5 // pred_check
        %p402 = pneg %p401
      $region54: #{tpu_custom_call.1} parent=5 // pred_check_branch
        %404 = sbr.rel (%p402) target = $region56
      $region55: #{tpu_custom_call.1} parent=5 // pred_region
        // Predicated region
        $region57: #{tpu_custom_call.1} parent=55 // pred_check
          %p405 = pneg %p44
        $region58: #{tpu_custom_call.1} parent=55 // pred_check_branch
          %407 = sbr.rel (%p405) target = $region60
        $region59: #{tpu_custom_call.1} parent=55 // pred_region
          %s408 = smul.u32 2, %s24
          %p409 = scmp.lt.s32.totalorder %s408, 7
          %s410 = scalar_select %p409, %s408, 7
          %s411 = smul.addr %s410, 4
          %s412 = scalar_lea.vmem %s0, %s411
          %s413 = smul.u32 2, %s24
        $region60: #{tpu_custom_call.1} parent=55 // pred_fallthru
          _
        // Predicated region
        $region61: #{tpu_custom_call.1} parent=55 // pred_check
          %p414 = pneg %p70
        $region62: #{tpu_custom_call.1} parent=55 // pred_check_branch
          %416 = sbr.rel (%p414) target = $region64
        $region63: #{tpu_custom_call.1} parent=55 // pred_region
          %s417 = smul.u32 2, %s24
          %p418 = scmp.lt.s32.totalorder %s417, 7
          %s419 = scalar_select %p418, %s417, 7
          %s420 = smul.addr %s419, 4
          %s421 = scalar_lea.vmem %s1, %s420
          %s422 = smul.u32 2, %s24
        $region64: #{tpu_custom_call.1} parent=55 // pred_fallthru
          _
      $region56: #{tpu_custom_call.1} parent=5 // pred_fallthru
        _
      %p423 = scmp.le.s32.totalorder 1, %s24
      %p424 = scmp.lt.s32.totalorder %s24, 5
      %p425 = pnand %p423, %p424
      %p426 = pneg %p425
      // Predicated region
      $region65: #{tpu_custom_call.1} parent=5 // pred_check
        _
      $region66: #{tpu_custom_call.1} parent=5 // pred_check_branch
        %428 = sbr.rel (%p425) target = $region68
      $region67: #{tpu_custom_call.1} parent=5 // pred_region
        %s429 = ssub.s32 %s24, 1
        // Predicated region
        $region69: #{tpu_custom_call.1} parent=67 // pred_check
          %p430 = pneg %p139
        $region70: #{tpu_custom_call.1} parent=67 // pred_check_branch
          %432 = sbr.rel (%p430) target = $region72
        $region71: #{tpu_custom_call.1} parent=67 // pred_region
          %434 = dma.done [#allocation3], 128
        $region72: #{tpu_custom_call.1} parent=67 // pred_fallthru
          _
        // Predicated region
        $region73: #{tpu_custom_call.1} parent=67 // pred_check
          %p435 = pneg %p181
        $region74: #{tpu_custom_call.1} parent=67 // pred_check_branch
          %437 = sbr.rel (%p435) target = $region76
        $region75: #{tpu_custom_call.1} parent=67 // pred_region
          %439 = dma.done [#allocation6], 128
        $region76: #{tpu_custom_call.1} parent=67 // pred_fallthru
          _
        // Predicated region
        $region77: #{tpu_custom_call.1} parent=67 // pred_check
          %p440 = pneg %p244
        $region78: #{tpu_custom_call.1} parent=67 // pred_check_branch
          %442 = sbr.rel (%p440) target = $region80
        $region79: #{tpu_custom_call.1} parent=67 // pred_region
          %444 = dma.done [#allocation6], 1024
        $region80: #{tpu_custom_call.1} parent=67 // pred_fallthru
          _
        // Predicated region
        $region81: #{tpu_custom_call.1} parent=67 // pred_check
          %p445 = pneg %p265
        $region82: #{tpu_custom_call.1} parent=67 // pred_check_branch
          %447 = sbr.rel (%p445) target = $region84
        $region83: #{tpu_custom_call.1} parent=67 // pred_region
          %449 = dma.done [#allocation9], 1024
        $region84: #{tpu_custom_call.1} parent=67 // pred_fallthru
          _
        %s450 = smul.u32 2, %s29
        %p451 = scmp.lt.s32.totalorder %s450, 7
        %s452 = scalar_select %p451, %s450, 7
        %s453 = smul.addr %s452, 4
        %s454 = scalar_lea.vmem %s0, %s453
        %p455 = pneg %p50
        %p456 = pneg %p47
        %s457 = smul.u32 2, %s29
        %p458 = scmp.lt.s32.totalorder %s457, 7
        %s459 = scalar_select %p458, %s457, 7
        %s460 = smul.addr %s459, 4
        %s461 = scalar_lea.vmem %s1, %s460
        %p462 = pneg %p76
        %p463 = pneg %p73
        %p464 = pneg %p97
        %p465 = pneg %p94
        %p466 = pneg %p118
        %p467 = pneg %p115
        %p468 = pneg %p139
        %p469 = pneg %p136
        %p470 = pneg %p160
        %p471 = pneg %p157
        %p472 = pneg %p181
        %p473 = pneg %p178
        %p474 = pneg %p202
        %p475 = pneg %p199
        %p476 = pneg %p223
        %p477 = pneg %p220
        %p478 = pneg %p244
        %p479 = pneg %p241
        %p480 = pneg %p265
        %p481 = pneg %p262
        %p482 = pneg %p286
        %p483 = pneg %p283
        %p484 = pneg %p312
        %p485 = pneg %p309
        %s486 = sand.u32 %s299, 1
        %s487 = scalar_lea.sflag [#allocation4], %s486
        %s488 = sand.u32 %s299, 1
        %s489 = smul.addr %s488, 16
        %s490 = scalar_lea.vmem [#allocation10], %s489
        %s491 = smul.u32 2, %s29
        %p492 = scmp.lt.s32.totalorder %s491, 7
        %s493 = scalar_select %p492, %s491, 7
        %s494 = smul.addr %s493, 4
        %s495 = scalar_lea.vmem %s0, %s494
        %s496 = smul.u32 2, %s29
        %s497 = smul.u32 2, %s29
        %p498 = scmp.lt.s32.totalorder %s497, 7
        %s499 = scalar_select %p498, %s497, 7
        %s500 = smul.addr %s499, 4
        %s501 = scalar_lea.vmem %s1, %s500
        %s502 = smul.u32 2, %s29
        %s503 = smul.u32 2, %s29
        %v506 = vld [vmem:[%s495] sm:$0xf]
        %v507 = vld [vmem:[%s495 + $0x4] sm:$0xf]
        %v508 = vld [vmem:[%s2] sm:$0xf]
        %v509 = vld [vmem:[%s2 + $0x4] sm:$0xf]
        %v510 = vld [vmem:[%s3] sm:$0x1]
        %v512 = vperm.slane %v510, 0
        %v516 = vunpack.c.l.b16 %v506
        %v517 = vunpack.c.l.b16 %v507
        %v518 = vpack.c.b16 %v517, %v516
        %v521 = vunpack.c.l.b16 %v508
        %v522 = vunpack.c.l.b16 %v509
        %v523 = vpack.c.b16 %v522, %v521
        %vm525 = vcmask 130048
        %v527 = vsel %vm525, %v518, 0
        %529 = vmatpush.bf16.msra.mxu0 0
        %530 = vmatpush.bf16.msra.mxu0 0
        %531 = vmatpush.bf16.msra.mxu0 0
        %532 = vmatpush.bf16.msra.mxu0 0
        %533 = vmatpush.bf16.msra.mxu0 0
        %534 = vmatpush.bf16.msra.mxu0 0
        %535 = vmatpush.bf16.msra.mxu0 0
        %536 = vmatpush.bf16.msra.mxu0 %v523
        %537 = vmatmul.bf16.gmra.mxu0 %v527
        %v538 = vpop.f32.mrf.mxu0
        %v539 = vadd.f32 %v512, %v538
        %v540 = vpop.f32.mrf.mxu0
        %v541 = vadd.f32 %v512, %v540
        %542 = vdwg.mxu0
        %v543 = vpack.c.bf16 %v541, %v539
        %v544 = vld [vmem:[#allocation2] sm:$0xf]
        %v545 = vld [vmem:[#allocation2 + $0x4] sm:$0xf]
        %v546 = vld [vmem:[%s5] sm:$0x1]
        %v548 = vperm.slane %v546, 0
        %v552 = vunpack.c.l.b16 %v544
        %v553 = vunpack.c.l.b16 %v545
        %v554 = vpack.c.b16 %v553, %v552
        %556 = vmatpush.bf16.msra.mxu0 0
        %557 = vmatpush.bf16.msra.mxu0 0
        %558 = vmatpush.bf16.msra.mxu0 0
        %559 = vmatpush.bf16.msra.mxu0 0
        %560 = vmatpush.bf16.msra.mxu0 0
        %561 = vmatpush.bf16.msra.mxu0 0
        %562 = vmatpush.bf16.msra.mxu0 0
        %563 = vmatpush.bf16.msra.mxu0 %v554
        %564 = vmatmul.bf16.gmra.mxu0 %v527
        %v565 = vpop.f32.mrf.mxu0
        %v566 = vadd.f32 %v548, %v565
        %v567 = vpop.f32.mrf.mxu0
        %v568 = vadd.f32 %v548, %v567
        %569 = vdwg.mxu0
        %v570 = vpack.c.bf16 %v568, %v566
        %v571 = vld [vmem:[%s501] sm:$0xf]
        %v572 = vld [vmem:[%s501 + $0x4] sm:$0xf]
        %v573 = vunpack.c.l.bf16 %v571
        %v574 = vunpack.c.l.bf16 %v572
        %v575 = vmul.f32 %v573, %v573
        %v576 = vmul.f32 %v574, %v574
        %v577 = vsel %vm525, %v575, 0.0
        %578 = vadd.xlane.f32.xlu0 %v577
        %v579 = vpop.xlane.xlu0 %578
        %v580 = vsel %vm525, %v576, 0.0
        %581 = vadd.xlane.f32.xlu0 %v580
        %v582 = vpop.xlane.xlu0 %581
        %v583 = vmax.f32 %v579, 1e-24
        %v584 = vmax.f32 %v582, 1e-24
        %v585 = vrsqrt.pop %v583
        %v586 = vmul.f32 %v585, %v583
        %v587 = vmul.f32 %v586, %v585
        %v588 = vmul.f32 0.5, %v587
        %v589 = vsub.f32 1.5, %v588
        %v590 = vmul.f32 %v585, %v589
        %vm591 = vweird.f32 %v583
        %vm592 = vweird.f32 %v585
        %vm593 = vmor %vm591, %vm592
        %v594 = vsel %vm593, %v585, %v590
        %v595 = vrsqrt.pop %v584
        %v596 = vmul.f32 %v595, %v584
        %v597 = vmul.f32 %v596, %v595
        %v598 = vmul.f32 0.5, %v597
        %v599 = vsub.f32 1.5, %v598
        %v600 = vmul.f32 %v595, %v599
        %vm601 = vweird.f32 %v584
        %vm602 = vweird.f32 %v595
        %vm603 = vmor %vm601, %vm602
        %v604 = vsel %vm603, %v595, %v600
        %v605 = vpack.c.bf16 %v576, %v575
        %606 = vxpose.xlu0.c.b16.start [1/8] %v605, 128
        %607 = vxpose.xlu0.c.b16.cont [2/8] 0, 128
        %608 = vxpose.xlu0.c.b16.cont [3/8] 0, 128
        %609 = vxpose.xlu0.c.b16.cont [4/8] 0, 128
        %610 = vxpose.xlu0.c.b16.cont [5/8] 0, 128
        %611 = vxpose.xlu0.c.b16.cont [6/8] 0, 128
        %612 = vxpose.xlu0.c.b16.cont [7/8] 0, 128
        %613 = vxpose.xlu0.c.b16.end [8/8] 0, 128
        %v614 = vpop.trf.xlu0
        %v615 = vpop.trf.xlu0
        %v616 = vpop.trf.xlu0
        %v617 = vpop.trf.xlu0
        %v618 = vpop.trf.xlu0
        %v619 = vpop.trf.xlu0
        %v620 = vpop.trf.xlu0
        %v621 = vpop.trf.xlu0
        %v623 = vsel %vm525, %v614, 0
        %625 = vmatpush.bf16.msra.mxu0 0
        %626 = vmatpush.bf16.msra.mxu0 0
        %627 = vmatpush.bf16.msra.mxu0 0
        %628 = vmatpush.bf16.msra.mxu0 0
        %629 = vmatpush.bf16.msra.mxu0 0
        %630 = vmatpush.bf16.msra.mxu0 0
        %631 = vmatpush.bf16.msra.mxu0 0
        %632 = vmatpush.bf16.msra.mxu0 1065369472
        %633 = vmatmul.bf16.gmra.mxu0 %v623
        %v634 = vpop.f32.mrf.mxu0
        %v635 = vadd.f32 0.0, %v634
        %v636 = vpop.f32.mrf.mxu0
        %v637 = vadd.f32 0.0, %v636
        %638 = vdwg.mxu0
        %v639 = vmax.f32 %v635, 1e-24
        %v640 = vmax.f32 %v637, 1e-24
        %v641 = vrsqrt.pop %v639
        %v642 = vmul.f32 %v641, %v639
        %v643 = vmul.f32 %v642, %v641
        %v644 = vmul.f32 0.5, %v643
        %v645 = vsub.f32 1.5, %v644
        %v646 = vmul.f32 %v641, %v645
        %vm647 = vweird.f32 %v639
        %vm648 = vweird.f32 %v641
        %vm649 = vmor %vm647, %vm648
        %v650 = vsel %vm649, %v641, %v646
        %v651 = vrsqrt.pop %v640
        %v652 = vmul.f32 %v651, %v640
        %v653 = vmul.f32 %v652, %v651
        %v654 = vmul.f32 0.5, %v653
        %v655 = vsub.f32 1.5, %v654
        %v656 = vmul.f32 %v651, %v655
        %vm657 = vweird.f32 %v640
        %vm658 = vweird.f32 %v651
        %vm659 = vmor %vm657, %vm658
        %v660 = vsel %vm659, %v651, %v656
        %v663 = vunpack.c.l.b16 %v571
        %v664 = vunpack.c.l.b16 %v572
        %v665 = vpack.c.b16 %v664, %v663
        %v667 = vsel %vm525, %v665, 0
        %669 = vmatpush.bf16.msra.mxu0 0
        %670 = vmatpush.bf16.msra.mxu0 0
        %671 = vmatpush.bf16.msra.mxu0 0
        %672 = vmatpush.bf16.msra.mxu0 0
        %673 = vmatpush.bf16.msra.mxu0 0
        %674 = vmatpush.bf16.msra.mxu0 0
        %675 = vmatpush.bf16.msra.mxu0 0
        %676 = vmatpush.bf16.msra.mxu0 %v543
        %677 = vmatmul.bf16.gmra.mxu0 %v667
        %v678 = vpop.f32.mrf.mxu0
        %v679 = vadd.f32 0.0, %v678
        %v680 = vpop.f32.mrf.mxu0
        %v681 = vadd.f32 0.0, %v680
        %682 = vdwg.mxu0
        %v683 = vmul.f32 %v679, %v594
        %v684 = vmul.f32 %v681, %v604
        %v685 = vpack.c.bf16 %v684, %v683
        %687 = vxpose.xlu0.c.b16.start [1/8] %v665, 128
        %688 = vxpose.xlu0.c.b16.cont [2/8] 0, 128
        %689 = vxpose.xlu0.c.b16.cont [3/8] 0, 128
        %690 = vxpose.xlu0.c.b16.cont [4/8] 0, 128
        %691 = vxpose.xlu0.c.b16.cont [5/8] 0, 128
        %692 = vxpose.xlu0.c.b16.cont [6/8] 0, 128
        %693 = vxpose.xlu0.c.b16.cont [7/8] 0, 128
        %694 = vxpose.xlu0.c.b16.end [8/8] 0, 128
        %v695 = vpop.trf.xlu0
        %v696 = vpop.trf.xlu0
        %v697 = vpop.trf.xlu0
        %v698 = vpop.trf.xlu0
        %v699 = vpop.trf.xlu0
        %v700 = vpop.trf.xlu0
        %v701 = vpop.trf.xlu0
        %v702 = vpop.trf.xlu0
        %v704 = vsel %vm525, %v695, 0
        %706 = vmatpush.bf16.msra.mxu0 0
        %707 = vmatpush.bf16.msra.mxu0 0
        %708 = vmatpush.bf16.msra.mxu0 0
        %709 = vmatpush.bf16.msra.mxu0 0
        %710 = vmatpush.bf16.msra.mxu0 0
        %711 = vmatpush.bf16.msra.mxu0 0
        %712 = vmatpush.bf16.msra.mxu0 0
        %713 = vmatpush.bf16.msra.mxu0 %v570
        %714 = vmatmul.bf16.gmra.mxu0 %v704
        %v715 = vpop.f32.mrf.mxu0
        %v716 = vadd.f32 0.0, %v715
        %v717 = vpop.f32.mrf.mxu0
        %v718 = vadd.f32 0.0, %v717
        %719 = vdwg.mxu0
        %721 = vset.pattern.permute.xlu0 0
        %722 = vperm.xlu0 %721, %v650
        %v723 = vpop.permute.xlu0 %722
        %726 = vset.pattern.permute.xlu0 0
        %727 = vperm.xlu0 %726, %v660
        %v728 = vpop.permute.xlu0 %727
        %v730 = vmul.f32 %v716, %v723
        %v731 = vmul.f32 %v718, %v728
        %v732 = vpack.c.bf16 %v731, %v730
        %v733 = vld [vmem:[#allocation5] sm:$0xf]
        %v734 = vld [vmem:[#allocation5 + $0x4] sm:$0xf]
        %v735 = vld [vmem:[%s7] sm:$0x1]
        %v737 = vperm.slane %v735, 0
        %v741 = vunpack.c.l.b16 %v733
        %v742 = vunpack.c.l.b16 %v734
        %v743 = vpack.c.b16 %v742, %v741
        %745 = vmatpush.bf16.msra.mxu0 0
        %746 = vmatpush.bf16.msra.mxu0 0
        %747 = vmatpush.bf16.msra.mxu0 0
        %748 = vmatpush.bf16.msra.mxu0 0
        %749 = vmatpush.bf16.msra.mxu0 0
        %750 = vmatpush.bf16.msra.mxu0 0
        %751 = vmatpush.bf16.msra.mxu0 0
        %752 = vmatpush.bf16.msra.mxu0 %v743
        %753 = vmatmul.bf16.gmra.mxu0 %v527
        %v754 = vpop.f32.mrf.mxu0
        %v755 = vadd.f32 %v737, %v754
        %v756 = vpop.f32.mrf.mxu0
        %v757 = vadd.f32 %v737, %v756
        %758 = vdwg.mxu0
        %v759 = vld [vmem:[%s8] sm:$0xf]
        %v760 = vld [vmem:[%s8 + $0x4] sm:$0xf]
        %v761 = vld [vmem:[%s8 + $0x8] sm:$0xf]
        %v762 = vld [vmem:[%s8 + $0xc] sm:$0xf]
        %v763 = vld [vmem:[%s8 + $0x10] sm:$0xf]
        %v764 = vld [vmem:[%s8 + $0x14] sm:$0xf]
        %v765 = vld [vmem:[%s8 + $0x18] sm:$0xf]
        %v766 = vld [vmem:[%s8 + $0x1c] sm:$0xf]
        %v767 = vld [vmem:[%s8 + $0x20] sm:$0xf]
        %v768 = vld [vmem:[%s8 + $0x24] sm:$0xf]
        %v769 = vld [vmem:[%s8 + $0x28] sm:$0xf]
        %v770 = vld [vmem:[%s8 + $0x2c] sm:$0xf]
        %v771 = vld [vmem:[%s8 + $0x30] sm:$0xf]
        %v772 = vld [vmem:[%s8 + $0x34] sm:$0xf]
        %v773 = vld [vmem:[%s8 + $0x38] sm:$0xf]
        %v774 = vld [vmem:[%s8 + $0x3c] sm:$0xf]
        %v775 = vpack.c.bf16 %v757, %v755
        %v776 = vld [vmem:[#allocation7] sm:$0xf]
        %v777 = vld [vmem:[#allocation7 + $0x4] sm:$0xf]
        %v778 = vld [vmem:[#allocation7 + $0x8] sm:$0xf]
        %v779 = vld [vmem:[#allocation7 + $0xc] sm:$0xf]
        %v780 = vld [vmem:[#allocation7 + $0x10] sm:$0xf]
        %v781 = vld [vmem:[#allocation7 + $0x14] sm:$0xf]
        %v782 = vld [vmem:[#allocation7 + $0x18] sm:$0xf]
        %v783 = vld [vmem:[#allocation7 + $0x1c] sm:$0xf]
        %v784 = vld [vmem:[#allocation7 + $0x20] sm:$0xf]
        %v785 = vld [vmem:[#allocation7 + $0x24] sm:$0xf]
        %v786 = vld [vmem:[#allocation7 + $0x28] sm:$0xf]
        %v787 = vld [vmem:[#allocation7 + $0x2c] sm:$0xf]
        %v788 = vld [vmem:[#allocation7 + $0x30] sm:$0xf]
        %v789 = vld [vmem:[#allocation7 + $0x34] sm:$0xf]
        %v790 = vld [vmem:[#allocation7 + $0x38] sm:$0xf]
        %v791 = vld [vmem:[#allocation7 + $0x3c] sm:$0xf]
        %v808 = vunpack.c.l.b16 %v776
        %v809 = vunpack.c.l.b16 %v777
        %v810 = vunpack.c.l.b16 %v778
        %v811 = vunpack.c.l.b16 %v779
        %v812 = vunpack.c.l.b16 %v780
        %v813 = vunpack.c.l.b16 %v781
        %v814 = vunpack.c.l.b16 %v782
        %v815 = vunpack.c.l.b16 %v783
        %v816 = vunpack.c.l.b16 %v784
        %v817 = vunpack.c.l.b16 %v785
        %v818 = vunpack.c.l.b16 %v786
        %v819 = vunpack.c.l.b16 %v787
        %v820 = vunpack.c.l.b16 %v788
        %v821 = vunpack.c.l.b16 %v789
        %v822 = vunpack.c.l.b16 %v790
        %v823 = vunpack.c.l.b16 %v791
        %v824 = vpack.c.b16 %v809, %v808
        %v825 = vpack.c.b16 %v811, %v810
        %v826 = vpack.c.b16 %v813, %v812
        %v827 = vpack.c.b16 %v815, %v814
        %v828 = vpack.c.b16 %v817, %v816
        %v829 = vpack.c.b16 %v819, %v818
        %v830 = vpack.c.b16 %v821, %v820
        %v831 = vpack.c.b16 %v823, %v822
        %840 = vmatpush.bf16.msra.mxu0 %v831
        %841 = vmatpush.bf16.msra.mxu0 %v830
        %842 = vmatpush.bf16.msra.mxu0 %v829
        %843 = vmatpush.bf16.msra.mxu0 %v828
        %844 = vmatpush.bf16.msra.mxu0 %v827
        %845 = vmatpush.bf16.msra.mxu0 %v826
        %846 = vmatpush.bf16.msra.mxu0 %v825
        %847 = vmatpush.bf16.msra.mxu0 %v824
        %848 = vmatmul.bf16.gmra.mxu0 %v775
        %v849 = vpop.f32.mrf.mxu0
        %v850 = vadd.f32 0.0, %v849
        %v851 = vpop.f32.mrf.mxu0
        %v852 = vadd.f32 0.0, %v851
        %853 = vdwg.mxu0
        %v870 = vunpack.c.l.b16 %v759
        %v871 = vunpack.c.l.b16 %v760
        %v872 = vunpack.c.l.b16 %v761
        %v873 = vunpack.c.l.b16 %v762
        %v874 = vunpack.c.l.b16 %v763
        %v875 = vunpack.c.l.b16 %v764
        %v876 = vunpack.c.l.b16 %v765
        %v877 = vunpack.c.l.b16 %v766
        %v878 = vunpack.c.l.b16 %v767
        %v879 = vunpack.c.l.b16 %v768
        %v880 = vunpack.c.l.b16 %v769
        %v881 = vunpack.c.l.b16 %v770
        %v882 = vunpack.c.l.b16 %v771
        %v883 = vunpack.c.l.b16 %v772
        %v884 = vunpack.c.l.b16 %v773
        %v885 = vunpack.c.l.b16 %v774
        %v886 = vpack.c.b16 %v871, %v870
        %v887 = vpack.c.b16 %v873, %v872
        %v888 = vpack.c.b16 %v875, %v874
        %v889 = vpack.c.b16 %v877, %v876
        %v890 = vpack.c.b16 %v879, %v878
        %v891 = vpack.c.b16 %v881, %v880
        %v892 = vpack.c.b16 %v883, %v882
        %v893 = vpack.c.b16 %v885, %v884
        %902 = vmatpush.bf16.msra.mxu0 %v893
        %903 = vmatpush.bf16.msra.mxu0 %v892
        %904 = vmatpush.bf16.msra.mxu0 %v891
        %905 = vmatpush.bf16.msra.mxu0 %v890
        %906 = vmatpush.bf16.msra.mxu0 %v889
        %907 = vmatpush.bf16.msra.mxu0 %v888
        %908 = vmatpush.bf16.msra.mxu0 %v887
        %909 = vmatpush.bf16.msra.mxu0 %v886
        %910 = vmatmul.bf16.gmra.mxu0 %v685
        %v911 = vpop.f32.mrf.mxu0
        %v912 = vadd.f32 %v850, %v911
        %v913 = vpop.f32.mrf.mxu0
        %v914 = vadd.f32 %v852, %v913
        %915 = vdwg.mxu0
        %v916 = vld [vmem:[#allocation8] sm:$0xf]
        %v917 = vld [vmem:[#allocation8 + $0x4] sm:$0xf]
        %v918 = vld [vmem:[#allocation8 + $0x8] sm:$0xf]
        %v919 = vld [vmem:[#allocation8 + $0xc] sm:$0xf]
        %v920 = vld [vmem:[#allocation8 + $0x10] sm:$0xf]
        %v921 = vld [vmem:[#allocation8 + $0x14] sm:$0xf]
        %v922 = vld [vmem:[#allocation8 + $0x18] sm:$0xf]
        %v923 = vld [vmem:[#allocation8 + $0x1c] sm:$0xf]
        %v924 = vld [vmem:[#allocation8 + $0x20] sm:$0xf]
        %v925 = vld [vmem:[#allocation8 + $0x24] sm:$0xf]
        %v926 = vld [vmem:[#allocation8 + $0x28] sm:$0xf]
        %v927 = vld [vmem:[#allocation8 + $0x2c] sm:$0xf]
        %v928 = vld [vmem:[#allocation8 + $0x30] sm:$0xf]
        %v929 = vld [vmem:[#allocation8 + $0x34] sm:$0xf]
        %v930 = vld [vmem:[#allocation8 + $0x38] sm:$0xf]
        %v931 = vld [vmem:[#allocation8 + $0x3c] sm:$0xf]
        %v948 = vunpack.c.l.b16 %v916
        %v949 = vunpack.c.l.b16 %v917
        %v950 = vunpack.c.l.b16 %v918
        %v951 = vunpack.c.l.b16 %v919
        %v952 = vunpack.c.l.b16 %v920
        %v953 = vunpack.c.l.b16 %v921
        %v954 = vunpack.c.l.b16 %v922
        %v955 = vunpack.c.l.b16 %v923
        %v956 = vunpack.c.l.b16 %v924
        %v957 = vunpack.c.l.b16 %v925
        %v958 = vunpack.c.l.b16 %v926
        %v959 = vunpack.c.l.b16 %v927
        %v960 = vunpack.c.l.b16 %v928
        %v961 = vunpack.c.l.b16 %v929
        %v962 = vunpack.c.l.b16 %v930
        %v963 = vunpack.c.l.b16 %v931
        %v964 = vpack.c.b16 %v949, %v948
        %v965 = vpack.c.b16 %v951, %v950
        %v966 = vpack.c.b16 %v953, %v952
        %v967 = vpack.c.b16 %v955, %v954
        %v968 = vpack.c.b16 %v957, %v956
        %v969 = vpack.c.b16 %v959, %v958
        %v970 = vpack.c.b16 %v961, %v960
        %v971 = vpack.c.b16 %v963, %v962
        %980 = vmatpush.bf16.msra.mxu0 %v971
        %981 = vmatpush.bf16.msra.mxu0 %v970
        %982 = vmatpush.bf16.msra.mxu0 %v969
        %983 = vmatpush.bf16.msra.mxu0 %v968
        %984 = vmatpush.bf16.msra.mxu0 %v967
        %985 = vmatpush.bf16.msra.mxu0 %v966
        %986 = vmatpush.bf16.msra.mxu0 %v965
        %987 = vmatpush.bf16.msra.mxu0 %v964
        %988 = vmatmul.bf16.gmra.mxu0 %v732
        %v989 = vpop.f32.mrf.mxu0
        %v990 = vadd.f32 0.0, %v989
        %v991 = vpop.f32.mrf.mxu0
        %v992 = vadd.f32 0.0, %v991
        %993 = vdwg.mxu0
        %v994 = vadd.f32 %v912, %v990
        %v995 = vadd.f32 %v914, %v992
        %v996 = vld [vmem:[%s11] sm:$0x1]
        %v998 = vperm.slane %v996, 0
        %v1000 = vadd.f32 %v994, %v998
        %v1001 = vadd.f32 %v995, %v998
        %v1002 = vmax.f32 %v1000, 0.0
        %v1003 = vmax.f32 %v1001, 0.0
        %1004 = vst [vmem:[%s490] sm:$0xff] %v1002
        %1005 = vst [vmem:[%s490 + $0x8] sm:$0xff] %v1003
        %s1006 = sand.u32 %s299, 1
        %s1007 = scalar_lea.sflag [#allocation4], %s1006
        %s1008 = sand.u32 %s299, 1
        %s1009 = smul.addr %s1008, 16
        %s1010 = scalar_lea.vmem [#allocation10], %s1009
        // Predicated region
        $region85: #{tpu_custom_call.1} parent=67 // pred_check
          %p1011 = pneg %p309
        $region86: #{tpu_custom_call.1} parent=67 // pred_check_branch
          %1013 = sbr.rel (%p1011) target = $region88
        $region87: #{tpu_custom_call.1} parent=67 // pred_region
          %s1014 = smul.u32 2, %s29
          %1016 = vsyncadd %s1007, 0
          %s1017 = smul.addr %s1014, 8
          %s1018 = scalar_lea.hbm %s12, %s1017
          %s1019 = sshll.u32 %s1010, 4
          %s1020 = int_to_ptr.vmem [resolvable:$true] %s1019
          %s1021 = sshll.u32 %s1018, 4
          %s1022 = int_to_ptr.hbm [resolvable:$true] %s1021
          %1027 = dma.vmem_to_hbm [thread:$0]  %s1020, 256, %s1022, %s1007, 128, 128, 8
        $region88: #{tpu_custom_call.1} parent=67 // pred_fallthru
          _
      $region68: #{tpu_custom_call.1} parent=5 // pred_fallthru
        _
      %p1028 = scmp.le.s32.totalorder 2, %s24
      // Predicated region
      $region89: #{tpu_custom_call.1} parent=5 // pred_check
        %p1029 = pneg %p1028
      $region90: #{tpu_custom_call.1} parent=5 // pred_check_branch
        %1031 = sbr.rel (%p1029) target = $region92
      $region91: #{tpu_custom_call.1} parent=5 // pred_region
        %s1032 = ssub.s32 %s24, 2
        // Predicated region
        $region93: #{tpu_custom_call.1} parent=91 // pred_check
          %p1033 = pneg %p315
        $region94: #{tpu_custom_call.1} parent=91 // pred_check_branch
          %1035 = sbr.rel (%p1033) target = $region96
        $region95: #{tpu_custom_call.1} parent=91 // pred_region
          %s1036 = sand.u32 %s300, 1
          %s1037 = scalar_lea.sflag [#allocation4], %s1036
          %s1038 = sand.u32 %s300, 1
          %s1039 = smul.addr %s1038, 16
          %s1040 = scalar_lea.vmem [#allocation10], %s1039
          %1042 = dma.done %s1037, 256
        $region96: #{tpu_custom_call.1} parent=91 // pred_fallthru
          _
      $region92: #{tpu_custom_call.1} parent=5 // pred_fallthru
        _
    $region6: #{tpu_custom_call.1} parent=1 // loop_footer
      %s28 = sadd.s32 1, %s24
    $region7: #{tpu_custom_call.1} parent=1 // loop_footer_branch
      %23 = sbr.rel target = $region3
    $region8: #{tpu_custom_call.1} parent=1 // loop_exit
      _
    %1043 = vsyncpa [#allocation3], 1
    %s1044 = scalar_lea.sflag [#allocation3], 1
    %1045 = vsyncpa %s1044, 1
    %1046 = vsyncpa [#allocation6], 1
    %1047 = vsyncpa [#allocation9], 1
    %1048 = vsyncpa [#allocation4], 1
    %s1049 = scalar_lea.sflag [#allocation4], 1
    %1050 = vsyncpa %s1049, 1

</llo_original>
